<compile_context>
chip_gen: v5e
topology: v5e:2x2
jax: 0.10.0
libtpu: 0.0.40
codegen_flags: <defaults>
</compile_context>

<pallas_src>
import functools

import jax
import jax.numpy as jnp
from jax import lax
from jax.experimental import pallas as pl
from jax.experimental.pallas import tpu as pltpu


def _gdice_kernel(x_ref, t_ref, o_ref, *, s_total, dense_target, need_mask,
                  fuse_softmax):
    i = pl.program_id(1)   # spatial tile index (reduction axis)

    @pl.when(i == 0)
    def _():
        o_ref[...] = jnp.zeros_like(o_ref)

    def accumulate(mask_tail):
        x = x_ref[...].astype(jnp.float32)                    # (C, tm)
        C, tm = x.shape

        if fuse_softmax:
            # Per-pixel softmax over the class (sublane) axis; exp -> EUP,
            # class reduce -> XLU, both otherwise idle here.
            x = x - jnp.max(x, axis=0, keepdims=True)
            x = jnp.exp(x)
            x = x / jnp.sum(x, axis=0, keepdims=True)

        if mask_tail:
            col = lax.broadcasted_iota(jnp.int32, (1, tm), 1)
            valid = (i * tm + col) < s_total                  # (1, tm) bool
            x = jnp.where(valid, x, 0.0)

        if dense_target:
            t = t_ref[...].astype(jnp.float32)                # (C, tm)
            if mask_tail:
                t = jnp.where(valid, t, 0.0)
            ts = jnp.sum(t, axis=-1, keepdims=True)           # (C, 1)
            iss = jnp.sum(x * t, axis=-1, keepdims=True)      # (C, 1)
        else:
            labels = t_ref[...]                               # (1, tm) int
            if labels.dtype != jnp.int32:
                labels = labels.astype(jnp.int32)
            cls = lax.broadcasted_iota(jnp.int32, (C, tm), 0)
            eq = cls == labels                                # (C, tm) bool
            if mask_tail:
                eq = jnp.logical_and(eq, valid)
            ts = jnp.sum(eq.astype(jnp.float32), axis=-1, keepdims=True)
            iss = jnp.sum(jnp.where(eq, x, 0.0), axis=-1, keepdims=True)

        xs = jnp.sum(x, axis=-1, keepdims=True)               # (C, 1)

        # Tiny per-batch partial-sum accumulator resident in VMEM.
        o_ref[0, :, 0:1] += xs
        o_ref[0, :, 1:2] += ts
        o_ref[0, :, 2:3] += iss

    if need_mask:
        last = pl.num_programs(1) - 1

        @pl.when(i < last)
        def _():
            accumulate(False)      # fast path: no per-element masking

        @pl.when(i == last)
        def _():
            accumulate(True)       # ragged last tile only
    else:
        accumulate(False)


def gdice_loss_v2(net_output, gt, *, apply_nonlin=None, smooth=1e-5,
                  tm_max=128 * 1024):
    """Generalized Dice loss V2 (forward), matching GDiceLossV2.forward.

    apply_nonlin: None, a callable (applied outside the kernel), or the
    string "softmax" to fuse a class-axis softmax inside the kernel.
    """
    shp_x = net_output.shape
    N, C = int(shp_x[0]), int(shp_x[1])
    S = 1
    for d in shp_x[2:]:
        S *= int(d)

    # Match the torch no_grad() target handling.
    if gt.ndim != net_output.ndim:
        gt = gt.reshape((gt.shape[0], 1) + gt.shape[1:])
    dense_target = (gt.shape == net_output.shape)

    fuse_softmax = apply_nonlin == "softmax"
    if (apply_nonlin is not None) and not fuse_softmax:
        net_output = apply_nonlin(net_output)

    # Pure views — no HBM relayout.
    x = net_output.reshape(N, C, S)
    if dense_target:
        tgt = gt.reshape(N, C, S)
        t_cols = C
    else:
        # Stream integer labels at their native width (int8/int16/int32);
        # anything else is narrowed once to int32.
        # Note: labels outside [0, C) contribute an all-zero one-hot row
        # (matches jax.nn.one_hot; torch scatter_ would error instead).
        if not (jnp.issubdtype(gt.dtype, jnp.integer)
                and jnp.dtype(gt.dtype).itemsize <= 4):
            gt = gt.astype(jnp.int32)
        tgt = gt.reshape(N, 1, S)
        t_cols = 1

    x_itemsize = jnp.dtype(x.dtype).itemsize
    t_itemsize = jnp.dtype(tgt.dtype).itemsize

    # Tile size: biggest multiple of 128 whose double-buffered input blocks
    # fit a ~24 MiB VMEM budget (safe on v5e/v6e/v7x together with the
    # explicit 32 MiB vmem limit below).  Accumulators no longer scale with
    # tm, so all of VMEM goes to input blocks.
    per_col = 2 * (C * x_itemsize + t_cols * t_itemsize)
    vmem_budget = 24 * 1024 * 1024
    tm_fit = max(128, (vmem_budget // per_col) // 128 * 128)
    tm = int(min(tm_max, tm_fit))
    if S <= tm:
        tm = S                         # full-extent block is always legal
    n_tiles = pl.cdiv(S, tm)
    need_mask = (S % tm) != 0

    grid = (N, n_tiles)
    t_block = (None, C, tm) if dense_target else (None, 1, tm)

    sums = pl.pallas_call(
        functools.partial(
            _gdice_kernel,
            s_total=S,
            dense_target=dense_target,
            need_mask=need_mask,
            fuse_softmax=fuse_softmax,
        ),
        out_shape=jax.ShapeDtypeStruct((N, C, 3), jnp.float32),
        grid_spec=pltpu.PrefetchScalarGridSpec(
            num_scalar_prefetch=0,
            grid=grid,
            in_specs=[
                pl.BlockSpec((None, C, tm), lambda n, i: (n, 0, i)),
                pl.BlockSpec(t_block, lambda n, i: (n, 0, i)),
            ],
            out_specs=pl.BlockSpec((1, C, 3), lambda n, i: (n, 0, 0)),
        ),
        compiler_params=pltpu.CompilerParams(
            # Batch axis: independent per-batch partials -> megacore-safe
            # (2 TCs on v7x).  Spatial axis: reduction into the resident
            # per-batch output block.
            dimension_semantics=("parallel", "arbitrary"),
            vmem_limit_bytes=32 * 1024 * 1024,
        ),
    )(x, tgt)

    # Tiny epilogue in plain JAX: combine per-batch partials and form the
    # generalized-Dice scalar exactly as the torch module does.
    totals = jnp.sum(sums, axis=0)                 # (C, 3)
    xsum = totals[:, 0]
    tsum = totals[:, 1]
    isum = totals[:, 2]
    w = 1.0 / jnp.maximum(tsum * tsum, smooth)     # class weights
    intersect = jnp.sum(isum * w)
    denominator = jnp.sum((xsum + tsum) * w)
    return -2.0 * intersect / jnp.maximum(denominator, smooth)


def _reference_gdice(net_output, gt, smooth=1e-5):
    """Pure-JAX reference matching the torch module semantics."""
    if gt.ndim != net_output.ndim:
        gt = gt.reshape((gt.shape[0], 1) + gt.shape[1:])
    if gt.shape == net_output.shape:
        y_onehot = gt.astype(jnp.float32)
    else:
        num_classes = net_output.shape[1]
        labels = gt.astype(jnp.int32)[:, 0]
        y_onehot = jnp.moveaxis(
            jax.nn.one_hot(labels, num_classes, dtype=jnp.float32), -1, 1)

    def flatten(t):
        Cc = t.shape[1]
        order = (1, 0) + tuple(range(2, t.ndim))
        return jnp.transpose(t, order).reshape(Cc, -1)

    inp = flatten(net_output).astype(jnp.float32)
    tgt = flatten(y_onehot)
    target_sum = tgt.sum(-1)
    w = 1.0 / jnp.maximum(target_sum * target_sum, smooth)
    intersect = ((inp * tgt).sum(-1) * w).sum()
    denominator = ((inp + tgt).sum(-1) * w).sum()
    return -2.0 * intersect / jnp.maximum(denominator, smooth)


if __name__ == "__main__":
    key = jax.random.PRNGKey(0)
    k1, k2, k3 = jax.random.split(key, 3)

    # Test 1: integer-label path, S multiple of 128 (single full tile/batch).
    N, C, H, W = 2, 4, 16, 16
    net_output = jax.random.normal(k1, (N, C, H, W), dtype=jnp.float32)
    gt = jax.random.randint(k2, (N, H, W), 0, C, dtype=jnp.int32)
    loss = jax.block_until_ready(gdice_loss_v2(net_output, gt))
    ref = jax.block_until_ready(_reference_gdice(net_output, gt))
    assert jnp.allclose(loss, ref, rtol=1e-5, atol=1e-5), (loss, ref)

    # Test 2: ragged spatial extent (S=300) + int8 labels + forced small
    # tiles -> multi-tile accumulation, masked last tile, narrow labels.
    H2, W2 = 12, 25
    net2 = jax.random.normal(k3, (N, C, H2, W2), dtype=jnp.float32)
    gt2 = jax.random.randint(k2, (N, H2, W2), 0, C,
                             dtype=jnp.int32).astype(jnp.int8)
    loss2 = jax.block_until_ready(gdice_loss_v2(net2, gt2, tm_max=128))
    ref2 = jax.block_until_ready(_reference_gdice(net2, gt2))
    assert jnp.allclose(loss2, ref2, rtol=1e-5, atol=1e-5), (loss2, ref2)

    # Test 3: dense (same-shape) target path.
    y_dense = jnp.moveaxis(jax.nn.one_hot(gt, C, dtype=jnp.float32), -1, 1)
    loss3 = jax.block_until_ready(gdice_loss_v2(net_output, y_dense))
    ref3 = jax.block_until_ready(_reference_gdice(net_output, y_dense))
    assert jnp.allclose(loss3, ref3, rtol=1e-5, atol=1e-5), (loss3, ref3)

    # Test 4: fused in-kernel softmax over the class axis.
    loss4 = jax.block_until_ready(
        gdice_loss_v2(net_output, gt, apply_nonlin="softmax"))
    ref4 = jax.block_until_ready(
        _reference_gdice(jax.nn.softmax(net_output, axis=1), gt))
    assert jnp.allclose(loss4, ref4, rtol=1e-5, atol=1e-5), (loss4, ref4)

    print("KERNEL_OK")
</pallas_src>

<mosaic_0001>
module attributes {stable_mosaic.version = 11 : i64} {
  func.func @_gdice_kernel(%arg0: i32, %arg1: i32, %arg2: memref<1x4x256xf32, #tpu.memory_space<vmem>>, %arg3: memref<1x1x256xi32, #tpu.memory_space<vmem>>, %arg4: memref<1x4x3xf32, #tpu.memory_space<vmem>>) attributes {dimension_semantics = [#tpu.dimension_semantics<parallel>, #tpu.dimension_semantics<arbitrary>], iteration_bounds = array<i64: 2, 1>, scalar_prefetch = 0 : i64, scratch_operands = 0 : i64, tpu.core_type = #tpu.core_type<tc>, window_params = [{transform_indices = @transform_0, window_bounds = array<i64: 1, 4, 256>}, {transform_indices = @transform_1, window_bounds = array<i64: 1, 1, 256>}, {transform_indices = @transform_2, window_bounds = array<i64: 1, 4, 3>}]} {
    %c0_i32 = arith.constant 0 : i32
    %0 = arith.cmpi eq, %arg1, %c0_i32 : i32
    %1 = arith.extui %0 : i1 to i32
    %c0_i32_0 = arith.constant 0 : i32
    %2 = arith.cmpi ne, %1, %c0_i32_0 : i32
    scf.if %2 {
      %cst_25 = arith.constant 0.000000e+00 : f32
      %38 = vector.broadcast %cst_25 : f32 to vector<1x4x3xf32>
      %c0_26 = arith.constant 0 : index
      %c0_27 = arith.constant 0 : index
      %c0_28 = arith.constant 0 : index
      %39 = vector.load %arg4[%c0_26, %c0_27, %c0_28] : memref<1x4x3xf32, #tpu.memory_space<vmem>>, vector<1x4x3xf32>
      tpu.vector_store %arg4[%c0_26, %c0_27, %c0_28], %38 {strides = array<i32>} : memref<1x4x3xf32, #tpu.memory_space<vmem>>, vector<1x4x3xf32>,
    } else {
    }
    %c0 = arith.constant 0 : index
    %c0_1 = arith.constant 0 : index
    %c0_2 = arith.constant 0 : index
    %3 = vector.load %arg2[%c0, %c0_1, %c0_2] : memref<1x4x256xf32, #tpu.memory_space<vmem>>, vector<1x4x256xf32>
    %4 = vector.shape_cast %3 : vector<1x4x256xf32> to vector<4x256xf32>
    %c0_3 = arith.constant 0 : index
    %c0_4 = arith.constant 0 : index
    %c0_5 = arith.constant 0 : index
    %5 = vector.load %arg3[%c0_3, %c0_4, %c0_5] : memref<1x1x256xi32, #tpu.memory_space<vmem>>, vector<1x1x256xi32>
    %6 = vector.shape_cast %5 : vector<1x1x256xi32> to vector<1x256xi32>
    %7 = tpu.iota {dimensions = array<i32: 0>} : vector<4x256xi32>
    %8 = vector.broadcast %6 : vector<1x256xi32> to vector<4x256xi32>
    %9 = arith.cmpi eq, %7, %8 : vector<4x256xi32>
    %10 = arith.extui %9 : vector<4x256xi1> to vector<4x256xi32>
    %11 = arith.sitofp %10 : vector<4x256xi32> to vector<4x256xf32>
    %cst = arith.constant dense<0.000000e+00> : vector<4xf32>
    %12 = vector.multi_reduction <add>, %11, %cst [1] : vector<4x256xf32> to vector<4xf32>
    %13 = vector.shape_cast %12 : vector<4xf32> to vector<4x1xf32>
    %cst_6 = arith.constant 0.000000e+00 : f32
    %14 = vector.broadcast %cst_6 : f32 to vector<4x256xf32>
    %15 = arith.select %9, %4, %14 : vector<4x256xi1>, vector<4x256xf32>
    %cst_7 = arith.constant dense<0.000000e+00> : vector<4xf32>
    %16 = vector.multi_reduction <add>, %15, %cst_7 [1] : vector<4x256xf32> to vector<4xf32>
    %17 = vector.shape_cast %16 : vector<4xf32> to vector<4x1xf32>
    %cst_8 = arith.constant dense<0.000000e+00> : vector<4xf32>
    %18 = vector.multi_reduction <add>, %4, %cst_8 [1] : vector<4x256xf32> to vector<4xf32>
    %19 = vector.shape_cast %18 : vector<4xf32> to vector<4x1xf32>
    %c0_9 = arith.constant 0 : index
    %c0_10 = arith.constant 0 : index
    %c0_11 = arith.constant 0 : index
    %20 = vector.load %arg4[%c0_9, %c0_10, %c0_11] : memref<1x4x3xf32, #tpu.memory_space<vmem>>, vector<1x4x1xf32>
    %21 = vector.shape_cast %20 : vector<1x4x1xf32> to vector<4x1xf32>
    %22 = arith.addf %21, %19 : vector<4x1xf32>
    %c0_12 = arith.constant 0 : index
    %c0_13 = arith.constant 0 : index
    %c0_14 = arith.constant 0 : index
    %23 = vector.load %arg4[%c0_12, %c0_13, %c0_14] : memref<1x4x3xf32, #tpu.memory_space<vmem>>, vector<1x4x1xf32>
    %24 = vector.shape_cast %23 : vector<1x4x1xf32> to vector<4x1xf32>
    %25 = vector.shape_cast %22 : vector<4x1xf32> to vector<1x4x1xf32>
    tpu.vector_store %arg4[%c0_12, %c0_13, %c0_14], %25 {strides = array<i32>} : memref<1x4x3xf32, #tpu.memory_space<vmem>>, vector<1x4x1xf32>,
    %c0_15 = arith.constant 0 : index
    %c0_16 = arith.constant 0 : index
    %c1 = arith.constant 1 : index
    %26 = vector.load %arg4[%c0_15, %c0_16, %c1] : memref<1x4x3xf32, #tpu.memory_space<vmem>>, vector<1x4x1xf32>
    %27 = vector.shape_cast %26 : vector<1x4x1xf32> to vector<4x1xf32>
    %28 = arith.addf %27, %13 : vector<4x1xf32>
    %c0_17 = arith.constant 0 : index
    %c0_18 = arith.constant 0 : index
    %c1_19 = arith.constant 1 : index
    %29 = vector.load %arg4[%c0_17, %c0_18, %c1_19] : memref<1x4x3xf32, #tpu.memory_space<vmem>>, vector<1x4x1xf32>
    %30 = vector.shape_cast %29 : vector<1x4x1xf32> to vector<4x1xf32>
    %31 = vector.shape_cast %28 : vector<4x1xf32> to vector<1x4x1xf32>
    tpu.vector_store %arg4[%c0_17, %c0_18, %c1_19], %31 {strides = array<i32>} : memref<1x4x3xf32, #tpu.memory_space<vmem>>, vector<1x4x1xf32>,
    %c0_20 = arith.constant 0 : index
    %c0_21 = arith.constant 0 : index
    %c2 = arith.constant 2 : index
    %32 = vector.load %arg4[%c0_20, %c0_21, %c2] : memref<1x4x3xf32, #tpu.memory_space<vmem>>, vector<1x4x1xf32>
    %33 = vector.shape_cast %32 : vector<1x4x1xf32> to vector<4x1xf32>
    %34 = arith.addf %33, %17 : vector<4x1xf32>
    %c0_22 = arith.constant 0 : index
    %c0_23 = arith.constant 0 : index
    %c2_24 = arith.constant 2 : index
    %35 = vector.load %arg4[%c0_22, %c0_23, %c2_24] : memref<1x4x3xf32, #tpu.memory_space<vmem>>, vector<1x4x1xf32>
    %36 = vector.shape_cast %35 : vector<1x4x1xf32> to vector<4x1xf32>
    %37 = vector.shape_cast %34 : vector<4x1xf32> to vector<1x4x1xf32>
    tpu.vector_store %arg4[%c0_22, %c0_23, %c2_24], %37 {strides = array<i32>} : memref<1x4x3xf32, #tpu.memory_space<vmem>>, vector<1x4x1xf32>,
    return
  }
  func.func @transform_0(%arg0: i32, %arg1: i32) -> (i32, i32, i32) {
    %c0_i32 = arith.constant 0 : i32
    %c0_i32_0 = arith.constant 0 : i32
    return %arg0, %c0_i32, %arg1 : i32, i32, i32
  }
  func.func @transform_1(%arg0: i32, %arg1: i32) -> (i32, i32, i32) {
    %c0_i32 = arith.constant 0 : i32
    %c0_i32_0 = arith.constant 0 : i32
    return %arg0, %c0_i32, %arg1 : i32, i32, i32
  }
  func.func @transform_2(%arg0: i32, %arg1: i32) -> (i32, i32, i32) {
    %c0_i32 = arith.constant 0 : i32
    %c0_i32_0 = arith.constant 0 : i32
    %c0_i32_1 = arith.constant 0 : i32
    return %arg0, %c0_i32, %c0_i32_0 : i32, i32, i32
  }
}

</mosaic_0001>

<llo_original>
// kernel: tpu_custom_call.1
$region0: #{tpu_custom_call.1}
  #allocation0 [shape = 'u32[]', space=smem, size = 0x4, offset = 0x4, fixed_abs, tag = 'smem constant byte address 0x4 - core index']
  #allocation1 [shape = 'u32[72,128]{1,0:T(1,128)}', space=vmem, size = 0x9000, scoped, tag = 'internal scratch']
  %s0 = inlined_call_operand.hbm [shape: f32[2,4,256], index: 0, kind: input, shape index: {}]
  %s1 = inlined_call_operand.hbm [shape: s32[2,1,256], index: 1, kind: input, shape index: {}]
  %s2 = inlined_call_operand.vmem [shape: f32[2,4,3], index: 2, kind: output, shape index: {}]
  %s3 = sld [smem:[#allocation0]]
  $region53: #{tpu_custom_call.1} parent=0
    _
  %s5 = ssub.s32 1, %s3
  %s6 = scalar_select 0, %s5, %s3
  $region1: #{tpu_custom_call.1} parent=0
    #allocation2 [shape = 'u8[8192]{0}', space=vmem, size = 0x2000, scoped, tag = 'input window, operand 0']
    #allocation3 [shape = 's32[2]{0}', space=sflag, size = 0x8, scoped, tag = 'scoped memory for tpu_custom_call.1']
    #allocation4 [shape = 'u8[2048]{0}', space=vmem, size = 0x800, scoped, tag = 'input window, operand 1']
    #allocation5 [shape = 's32[2]{0}', space=sflag, size = 0x8, scoped, tag = 'scoped memory for tpu_custom_call.1']
    %7 = vsyncpa [#allocation3], 0
    %s8 = scalar_lea.sflag [#allocation3], 1
    %9 = vsyncpa %s8, 0
    %10 = vsyncpa [#allocation5], 0
    %s11 = scalar_lea.sflag [#allocation5], 1
    %12 = vsyncpa %s11, 0
    loop: start=0, step=1, limit=4
    $region2: #{tpu_custom_call.1} parent=1 // loop_pre_header
      _
    $region3: #{tpu_custom_call.1} parent=1 // loop_header
      %s14 = sphi 0, %s18
      %p15 = scmp.ge.s32.totalorder %s14, 4
      %s21 = sphi 0, %s33
      %s22 = sphi 0, %s29
      %s23 = sphi 0, %s21
      %s24 = sphi 0, %s22
      %s25 = sphi 0, %s23
      %s26 = sphi 0, %s24
      %s38 = sphi 0, %s40
      %s41 = sphi 0, %s38
      %s42 = sphi 0, %s41
      %s58 = sphi 0, %s42
      %s66 = sphi 0, %s68
      %s69 = sphi 0, %s66
      %s70 = sphi 0, %s69
      %s86 = sphi 0, %s70
      %s92 = sphi 0, %s94
      %s95 = sphi 0, %s92
      %s96 = sphi 0, %s95
      %s112 = sphi 0, %s96
    $region4: #{tpu_custom_call.1} parent=1 // loop_header_branch
      %17 = sbr.rel (%p15) target = $region8
    $region5: #{tpu_custom_call.1} parent=1 // loop_body
      %s19 = ssub.s32 %s14, 1
      %s20 = ssub.s32 %s14, 2
      %s27 = sadd.s32 1, %s22
      %p28 = scmp.ge.s32.totalorder %s27, 1
      %s29 = scalar_select %p28, 0, %s27
      %s30 = sadd.s32 1, %s21
      %s31 = scalar_select %p28, %s30, %s21
      %p32 = scmp.ge.s32.totalorder %s31, 2
      %s33 = scalar_select %p32, 0, %s31
      %s34 = ssub.s32 %s21, %s33
      %s35 = ssub.s32 %s22, %s29
      %s36 = sor.u32 %s34, %s35
      %p37 = scmp.eq.s32.totalorder %s36, 0
      %s39 = sadd.s32 %s38, 1
      %s40 = scalar_select %p37, %s38, %s39
      %p43 = pneg %p37
      %p44 = scmp.eq.s32.totalorder %s14, 1
      %p45 = por %p43, %p44
      %p46 = scmp.ne.s32.totalorder %s38, %s41
      %p47 = scmp.eq.s32.totalorder %s14, 0
      %p48 = por %p46, %p47
      %p49 = scmp.ne.s32.totalorder %s38, %s41
      %p50 = scmp.eq.s32.totalorder %s19, 1
      %p51 = por %p49, %p50
      %p52 = scmp.ne.s32.totalorder %s41, %s42
      %p53 = scmp.eq.s32.totalorder %s19, 0
      %p54 = por %p52, %p53
      %p55 = scmp.ne.s32.totalorder %s41, %s42
      %p56 = scmp.eq.s32.totalorder %s20, 1
      %p57 = por %p55, %p56
      %p59 = scmp.ne.s32.totalorder %s42, %s58
      %p60 = scmp.eq.s32.totalorder %s20, 0
      %p61 = por %p59, %p60
      %s62 = ssub.s32 %s21, %s33
      %s63 = ssub.s32 %s22, %s29
      %s64 = sor.u32 %s62, %s63
      %p65 = scmp.eq.s32.totalorder %s64, 0
      %s67 = sadd.s32 %s66, 1
      %s68 = scalar_select %p65, %s66, %s67
      %p71 = pneg %p65
      %p72 = scmp.eq.s32.totalorder %s14, 1
      %p73 = por %p71, %p72
      %p74 = scmp.ne.s32.totalorder %s66, %s69
      %p75 = scmp.eq.s32.totalorder %s14, 0
      %p76 = por %p74, %p75
      %p77 = scmp.ne.s32.totalorder %s66, %s69
      %p78 = scmp.eq.s32.totalorder %s19, 1
      %p79 = por %p77, %p78
      %p80 = scmp.ne.s32.totalorder %s69, %s70
      %p81 = scmp.eq.s32.totalorder %s19, 0
      %p82 = por %p80, %p81
      %p83 = scmp.ne.s32.totalorder %s69, %s70
      %p84 = scmp.eq.s32.totalorder %s20, 1
      %p85 = por %p83, %p84
      %p87 = scmp.ne.s32.totalorder %s70, %s86
      %p88 = scmp.eq.s32.totalorder %s20, 0
      %p89 = por %p87, %p88
      %s90 = ssub.s32 %s21, %s33
      %p91 = scmp.eq.s32.totalorder %s90, 0
      %s93 = sadd.s32 %s92, 1
      %s94 = scalar_select %p91, %s92, %s93
      %p97 = pneg %p91
      %p98 = scmp.eq.s32.totalorder %s14, 1
      %p99 = por %p97, %p98
      %p100 = scmp.ne.s32.totalorder %s92, %s95
      %p101 = scmp.eq.s32.totalorder %s14, 0
      %p102 = por %p100, %p101
      %p103 = scmp.ne.s32.totalorder %s92, %s95
      %p104 = scmp.eq.s32.totalorder %s19, 1
      %p105 = por %p103, %p104
      %p106 = scmp.ne.s32.totalorder %s95, %s96
      %p107 = scmp.eq.s32.totalorder %s19, 0
      %p108 = por %p106, %p107
      %p109 = scmp.ne.s32.totalorder %s95, %s96
      %p110 = scmp.eq.s32.totalorder %s20, 1
      %p111 = por %p109, %p110
      %p113 = scmp.ne.s32.totalorder %s96, %s112
      %p114 = scmp.eq.s32.totalorder %s20, 0
      %p115 = por %p113, %p114
      %p116 = scmp.le.s32.totalorder 1, %s14
      %p117 = scmp.lt.s32.totalorder %s14, 3
      %p118 = pnand %p116, %p117
      %p119 = pneg %p118
      // Predicated region
      $region9: #{tpu_custom_call.1} parent=5 // pred_check
        _
      $region10: #{tpu_custom_call.1} parent=5 // pred_check_branch
        %121 = sbr.rel (%p118) target = $region12
      $region11: #{tpu_custom_call.1} parent=5 // pred_region
        %s122 = ssub.s32 %s14, 1
      $region12: #{tpu_custom_call.1} parent=5 // pred_fallthru
        _
      %p123 = scmp.lt.s32.totalorder %s14, 2
      // Predicated region
      $region13: #{tpu_custom_call.1} parent=5 // pred_check
        %p124 = pneg %p123
      $region14: #{tpu_custom_call.1} parent=5 // pred_check_branch
        %126 = sbr.rel (%p124) target = $region16
      $region15: #{tpu_custom_call.1} parent=5 // pred_region
        // Predicated region
        $region17: #{tpu_custom_call.1} parent=15 // pred_check
          %p127 = pneg %p48
        $region18: #{tpu_custom_call.1} parent=15 // pred_check_branch
          %129 = sbr.rel (%p127) target = $region20
        $region19: #{tpu_custom_call.1} parent=15 // pred_region
          %s130 = sand.u32 %s38, 1
          %s131 = scalar_lea.sflag [#allocation3], %s130
          %s132 = sand.u32 %s38, 1
          %s133 = smul.addr %s132, 8
          %s134 = scalar_lea.vmem [#allocation2], %s133
          %s135 = smul.u32 2, %s22
          %137 = vsyncadd %s131, 0
          %s138 = smul.addr %s21, 2
          %s139 = sadd.s32 %s135, %s138
          %s140 = smul.addr %s139, 4
          %s141 = scalar_lea.hbm %s0, %s140
          %s143 = sshll.u32 %s141, 4
          %s144 = int_to_ptr.hbm [resolvable:$true] %s143
          %s145 = sshll.u32 %s134, 4
          %s146 = int_to_ptr.vmem [resolvable:$true] %s145
          %148 = dma.hbm_to_vmem [thread:$0]  %s144, 128, %s146, %s131
        $region20: #{tpu_custom_call.1} parent=15 // pred_fallthru
          _
        // Predicated region
        $region21: #{tpu_custom_call.1} parent=15 // pred_check
          %p149 = pneg %p76
        $region22: #{tpu_custom_call.1} parent=15 // pred_check_branch
          %151 = sbr.rel (%p149) target = $region24
        $region23: #{tpu_custom_call.1} parent=15 // pred_region
          %s152 = sand.u32 %s66, 1
          %s153 = scalar_lea.sflag [#allocation5], %s152
          %s154 = sand.u32 %s66, 1
          %s155 = smul.addr %s154, 2
          %s156 = scalar_lea.vmem [#allocation4], %s155
          %s157 = smul.u32 2, %s22
          %159 = vsyncadd %s153, 0
          %s160 = smul.addr %s21, 2
          %s161 = sadd.s32 %s157, %s160
          %s162 = scalar_lea.hbm %s1, %s161
          %s164 = sshll.u32 %s162, 4
          %s165 = int_to_ptr.hbm [resolvable:$true] %s164
          %s166 = sshll.u32 %s156, 4
          %s167 = int_to_ptr.vmem [resolvable:$true] %s166
          %169 = dma.hbm_to_vmem [thread:$0]  %s165, 32, %s167, %s153
        $region24: #{tpu_custom_call.1} parent=15 // pred_fallthru
          _
      $region16: #{tpu_custom_call.1} parent=5 // pred_fallthru
        _
      %p170 = scmp.le.s32.totalorder 1, %s14
      %p171 = scmp.lt.s32.totalorder %s14, 3
      %p172 = pnand %p170, %p171
      %p173 = pneg %p172
      // Predicated region
      $region25: #{tpu_custom_call.1} parent=5 // pred_check
        _
      $region26: #{tpu_custom_call.1} parent=5 // pred_check_branch
        %175 = sbr.rel (%p172) target = $region28
      $region27: #{tpu_custom_call.1} parent=5 // pred_region
        %s176 = ssub.s32 %s14, 1
        %s177 = sand.u32 %s41, 1
        %s178 = scalar_lea.sflag [#allocation3], %s177
        %s179 = sand.u32 %s41, 1
        %s180 = smul.addr %s179, 8
        %s181 = scalar_lea.vmem [#allocation2], %s180
        // Predicated region
        $region29: #{tpu_custom_call.1} parent=27 // pred_check
          %p182 = pneg %p54
        $region30: #{tpu_custom_call.1} parent=27 // pred_check_branch
          %184 = sbr.rel (%p182) target = $region32
        $region31: #{tpu_custom_call.1} parent=27 // pred_region
          %186 = dma.done %s178, 128
        $region32: #{tpu_custom_call.1} parent=27 // pred_fallthru
          _
        %s187 = sand.u32 %s69, 1
        %s188 = scalar_lea.sflag [#allocation5], %s187
        %s189 = sand.u32 %s69, 1
        %s190 = smul.addr %s189, 2
        %s191 = scalar_lea.vmem [#allocation4], %s190
        // Predicated region
        $region33: #{tpu_custom_call.1} parent=27 // pred_check
          %p192 = pneg %p82
        $region34: #{tpu_custom_call.1} parent=27 // pred_check_branch
          %194 = sbr.rel (%p192) target = $region36
        $region35: #{tpu_custom_call.1} parent=27 // pred_region
          %196 = dma.done %s188, 32
        $region36: #{tpu_custom_call.1} parent=27 // pred_fallthru
          _
        %s197 = sand.u32 %s41, 1
        %s198 = scalar_lea.sflag [#allocation3], %s197
        %s199 = sand.u32 %s41, 1
        %s200 = smul.addr %s199, 8
        %s201 = scalar_lea.vmem [#allocation2], %s200
        %p202 = pneg %p54
        %p203 = pneg %p51
        %s204 = sand.u32 %s69, 1
        %s205 = scalar_lea.sflag [#allocation5], %s204
        %s206 = sand.u32 %s69, 1
        %s207 = smul.addr %s206, 2
        %s208 = scalar_lea.vmem [#allocation4], %s207
        %p209 = pneg %p82
        %p210 = pneg %p79
        %p211 = pneg %p108
        %p212 = pneg %p105
        %p213 = scmp.lt.s32.totalorder %s23, 1
        %s214 = scalar_select %p213, %s23, 1
        %s215 = smul.addr %s214, 4
        %s216 = scalar_lea.vmem %s2, %s215
        %s217 = smul.u32 2, %s24
        %s218 = smul.u32 2, %s24
        %p219 = scmp.lt.s32.totalorder %s23, 1
        %s220 = scalar_select %p219, %s23, 1
        %s221 = smul.addr %s220, 4
        %s222 = scalar_lea.vmem %s2, %s221
        %p223 = scmp.eq.s32.totalorder %s24, 0
        // Predicated region
        $region37: #{tpu_custom_call.1} parent=27 // pred_check
          %p224 = pneg %p223
        $region38: #{tpu_custom_call.1} parent=27 // pred_check_branch
          %226 = sbr.rel (%p224) target = $region40
        $region39: #{tpu_custom_call.1} parent=27 // pred_region
          %vm227 = vcmask 19456
          %228 = vst.msk [vmem:[%s222] sm:$0xf] %vm227, 0.0
        $region40: #{tpu_custom_call.1} parent=27 // pred_fallthru
          _
        %v229 = vld [vmem:[%s181] sm:$0xff]
        %v230 = vld [vmem:[%s191] sm:$0x3]
        %v231 = vlaneseq
        %v232 = vshrl.u32 %v231, 7
        %v233 = vperm.slane %v230, 0
        %v234 = vperm.slane %v230, 1
        %vm235 = vcmp.eq.s32.totalorder %v232, %v233
        %vm236 = vcmp.eq.s32.totalorder %v232, %v234
        %v237 = vsel %vm235, 1, 0
        %v238 = vsel %vm236, 1, 0
        %v239 = vcvt.s32.f32 %v237
        %v240 = vcvt.s32.f32 %v238
        %vm241 = vcmask 1043456
        %v242 = vsel %vm241, %v239, 0.0
        %v243 = vsel %vm241, %v240, 0.0
        %v244 = vadd.f32 %v242, %v243
        %245 = vadd.xlane.f32.xlu0 %v244
        %v246 = vpop.xlane.xlu0 %245
        %248 = vst [vmem:[#allocation1] ss:$2 sm:$0xff] %v229
        %v249 = vld.sshfl [vmem:[#allocation1] sm:$0xff pattern:$0x75316420]
        %v250 = vld.sshfl [vmem:[#allocation1 + $0x8] sm:$0xff pattern:$0x75316420]
        %v253 = vsel %vm235, %v249, 0.0
        %v254 = vsel %vm236, %v250, 0.0
        %v255 = vsel %vm241, %v253, 0.0
        %v256 = vsel %vm241, %v254, 0.0
        %v257 = vadd.f32 %v255, %v256
        %258 = vadd.xlane.f32.xlu0 %v257
        %v259 = vpop.xlane.xlu0 %258
        %260 = vst [vmem:[#allocation1] ss:$2 sm:$0xff] %v229
        %v261 = vld.sshfl [vmem:[#allocation1] sm:$0xff pattern:$0x75316420]
        %v262 = vld.sshfl [vmem:[#allocation1 + $0x8] sm:$0xff pattern:$0x75316420]
        %v265 = vsel %vm241, %v261, 0.0
        %v266 = vsel %vm241, %v262, 0.0
        %v267 = vadd.f32 %v265, %v266
        %268 = vadd.xlane.f32.xlu0 %v267
        %v269 = vpop.xlane.xlu0 %268
        %v270 = vld [vmem:[%s222] sm:$0xf]
        %v271 = vadd.f32 %v270, %v269
        %vm272 = vcmask 3072
        %273 = vst.msk [vmem:[%s222] sm:$0xf] %vm272, %v271
        %v274 = vld [vmem:[%s222] sm:$0xf]
        %v275 = vadd.f32 %v274, %v246
        %vm276 = vcmask 11272
        %277 = vst.msk [vmem:[%s222] sm:$0xf] %vm276, %v275
        %v278 = vld [vmem:[%s222] sm:$0xf]
        %v279 = vadd.f32 %v278, %v259
        %vm280 = vcmask 19472
        %281 = vst.msk [vmem:[%s222] sm:$0xf] %vm280, %v279
        %p282 = scmp.lt.s32.totalorder %s23, 1
        %s283 = scalar_select %p282, %s23, 1
        %s284 = smul.addr %s283, 4
        %s285 = scalar_lea.vmem %s2, %s284
        // Predicated region
        $region41: #{tpu_custom_call.1} parent=27 // pred_check
          %p286 = pneg %p105
        $region42: #{tpu_custom_call.1} parent=27 // pred_check_branch
          %288 = sbr.rel (%p286) target = $region44
        $region43: #{tpu_custom_call.1} parent=27 // pred_region
          _
        $region44: #{tpu_custom_call.1} parent=27 // pred_fallthru
          _
      $region28: #{tpu_custom_call.1} parent=5 // pred_fallthru
        _
      %p289 = scmp.le.s32.totalorder 2, %s14
      // Predicated region
      $region45: #{tpu_custom_call.1} parent=5 // pred_check
        %p290 = pneg %p289
      $region46: #{tpu_custom_call.1} parent=5 // pred_check_branch
        %292 = sbr.rel (%p290) target = $region48
      $region47: #{tpu_custom_call.1} parent=5 // pred_region
        %s293 = ssub.s32 %s14, 2
        // Predicated region
        $region49: #{tpu_custom_call.1} parent=47 // pred_check
          %p294 = pneg %p111
        $region50: #{tpu_custom_call.1} parent=47 // pred_check_branch
          %296 = sbr.rel (%p294) target = $region52
        $region51: #{tpu_custom_call.1} parent=47 // pred_region
          %p297 = scmp.lt.s32.totalorder %s25, 1
          %s298 = scalar_select %p297, %s25, 1
          %s299 = smul.addr %s298, 4
          %s300 = scalar_lea.vmem %s2, %s299
        $region52: #{tpu_custom_call.1} parent=47 // pred_fallthru
          _
      $region48: #{tpu_custom_call.1} parent=5 // pred_fallthru
        _
    $region6: #{tpu_custom_call.1} parent=1 // loop_footer
      %s18 = sadd.s32 1, %s14
    $region7: #{tpu_custom_call.1} parent=1 // loop_footer_branch
      %13 = sbr.rel target = $region3
    $region8: #{tpu_custom_call.1} parent=1 // loop_exit
      _
    %301 = vsyncpa [#allocation3], 1
    %s302 = scalar_lea.sflag [#allocation3], 1
    %303 = vsyncpa %s302, 1
    %304 = vsyncpa [#allocation5], 1
    %s305 = scalar_lea.sflag [#allocation5], 1
    %306 = vsyncpa %s305, 1

</llo_original>
